<compile_context>
chip_gen: v7x
topology: tpu7x:2x2x1
jax: 0.10.0
libtpu: 0.0.40
codegen_flags: <defaults>
</compile_context>

<pallas_src>
import jax
import jax.numpy as jnp
from jax.experimental import pallas as pl
from jax.experimental.pallas import tpu as pltpu


def _conv1x1_skip_kernel(x_ref, w_ref, b_ref, o_ref):
    # x_ref: (C_in, tn)   spatial tile of one batch element (NCHW-native layout)
    # w_ref: (C_out, C_in) effective weight = 0.5 * (softmax(W) + I)
    # b_ref: (C_out, 1)    effective bias   = 0.5 * b
    # o_ref: (C_out, tn)
    y = jnp.dot(w_ref[...], x_ref[...], preferred_element_type=jnp.float32)
    o_ref[...] = (y + b_ref[...]).astype(o_ref.dtype)


def reconstruct_layer_forward(x_nchw, weight, bias, *, tn_max=2048):
    """x_nchw: (B, C_in, H, W); weight: (C_out, C_in, 1, 1); bias: (C_out,)."""
    B, C_in, H, W = x_nchw.shape
    C_out = weight.shape[0]
    assert C_in == C_out, "skip_connect=True requires in_channels == out_channels"
    HW = H * W

    # Free reshape — no data movement, stays in NCHW memory order.
    x3 = x_nchw.reshape(B, C_in, HW)

    # Tiny O(C^2) weight prep, done once outside the grid:
    # softmax over in_channels, then fold the skip average and the 0.5 scale.
    w2d = weight.reshape(C_out, C_in).astype(jnp.float32)
    w_soft = jax.nn.softmax(w2d, axis=1)
    w_eff = 0.5 * (w_soft + jnp.eye(C_in, dtype=jnp.float32))
    b_eff = (0.5 * bias.astype(jnp.float32)).reshape(C_out, 1)

    # Spatial (lane) tile: full HW if small, else a 128-multiple tile up to tn_max.
    assert tn_max % 128 == 0
    tn = HW if HW <= tn_max else tn_max
    grid = (B, pl.cdiv(HW, tn))

    nbytes = jnp.dtype(x_nchw.dtype).itemsize
    cost = pl.CostEstimate(
        flops=2 * B * HW * C_in * C_out,
        transcendentals=0,
        bytes_accessed=2 * B * C_in * HW * nbytes + C_out * C_in * 4 + C_out * 4,
    )

    out3 = pl.pallas_call(
        _conv1x1_skip_kernel,
        out_shape=jax.ShapeDtypeStruct((B, C_out, HW), x_nchw.dtype),
        grid_spec=pltpu.PrefetchScalarGridSpec(
            num_scalar_prefetch=0,
            grid=grid,
            in_specs=[
                pl.BlockSpec((None, C_in, tn), lambda b, j: (b, 0, j)),
                pl.BlockSpec((C_out, C_in), lambda b, j: (0, 0)),
                pl.BlockSpec((C_out, 1), lambda b, j: (0, 0)),
            ],
            out_specs=pl.BlockSpec((None, C_out, tn), lambda b, j: (b, 0, j)),
        ),
        compiler_params=pltpu.CompilerParams(
            dimension_semantics=("parallel", "parallel"),
        ),
        cost_estimate=cost,
    )(x3, w_eff, b_eff)

    return out3.reshape(B, C_out, H, W)


def _reference(x_nchw, weight, bias):
    """Pure-JAX reference of the same forward (eval-mode semantics)."""
    C_out, C_in = weight.shape[0], weight.shape[1]
    w2d = weight.reshape(C_out, C_in)
    w_soft = jax.nn.softmax(w2d, axis=1)
    conv = jnp.einsum("bchw,oc->bohw", x_nchw, w_soft) + bias[None, :, None, None]
    return (conv + x_nchw) * 0.5


if __name__ == "__main__":
    # Module defaults: in_channels = out_channels = 128; small spatial/batch.
    B, C, Hs, Ws = 2, 128, 8, 8

    key = jax.random.PRNGKey(0)
    kx, kw, kb = jax.random.split(key, 3)
    x = jax.random.normal(kx, (B, C, Hs, Ws), dtype=jnp.float32)
    # Deterministic synthetic parameters (Conv2d(C, C, kernel_size=1, bias=True)).
    weight = jax.random.normal(kw, (C, C, 1, 1), dtype=jnp.float32) * 0.05
    bias = jax.random.normal(kb, (C,), dtype=jnp.float32) * 0.05

    out = reconstruct_layer_forward(x, weight, bias)
    out = jax.block_until_ready(out)

    ref = _reference(x, weight, bias)
    assert out.shape == (B, C, Hs, Ws)
    assert jnp.allclose(out, ref, atol=1e-5, rtol=1e-5)

    print("KERNEL_OK")
</pallas_src>

<mosaic_0001>
module attributes {stable_mosaic.version = 11 : i64} {
  func.func @_conv1x1_skip_kernel(%arg0: i32, %arg1: i32, %arg2: memref<1x128x64xf32, #tpu.memory_space<vmem>>, %arg3: memref<128x128xf32, #tpu.memory_space<vmem>>, %arg4: memref<128x1xf32, #tpu.memory_space<vmem>>, %arg5: memref<1x128x64xf32, #tpu.memory_space<vmem>>) attributes {dimension_semantics = [#tpu.dimension_semantics<parallel>, #tpu.dimension_semantics<parallel>], iteration_bounds = array<i64: 2, 1>, scalar_prefetch = 0 : i64, scratch_operands = 0 : i64, tpu.core_type = #tpu.core_type<tc>, window_params = [{transform_indices = @transform_0, window_bounds = array<i64: 1, 128, 64>}, {pipeline_mode = #tpu.pipeline_mode<synchronous>, transform_indices = @transform_1, window_bounds = array<i64: 128, 128>}, {pipeline_mode = #tpu.pipeline_mode<synchronous>, transform_indices = @transform_2, window_bounds = array<i64: 128, 1>}, {transform_indices = @transform_3, window_bounds = array<i64: 1, 128, 64>}]} {
    %c0 = arith.constant 0 : index
    %c0_0 = arith.constant 0 : index
    %0 = vector.load %arg3[%c0, %c0_0] : memref<128x128xf32, #tpu.memory_space<vmem>>, vector<128x128xf32>
    %c0_1 = arith.constant 0 : index
    %c0_2 = arith.constant 0 : index
    %c0_3 = arith.constant 0 : index
    %1 = vector.load %arg2[%c0_1, %c0_2, %c0_3] : memref<1x128x64xf32, #tpu.memory_space<vmem>>, vector<1x128x64xf32>
    %2 = vector.shape_cast %1 : vector<1x128x64xf32> to vector<128x64xf32>
    %cst = arith.constant dense<0.000000e+00> : vector<128x64xf32>
    %3 = tpu.matmul %0, %2, %cst {dimension_numbers = #tpu.dot_dimension_numbers<[1], [0], [0], [1], [0, 0, 1, 1], [], []>} : vector<128x128xf32>, vector<128x64xf32>, vector<128x64xf32> -> vector<128x64xf32>
    %c0_4 = arith.constant 0 : index
    %c0_5 = arith.constant 0 : index
    %4 = vector.load %arg4[%c0_4, %c0_5] : memref<128x1xf32, #tpu.memory_space<vmem>>, vector<128x1xf32>
    %5 = vector.broadcast %4 : vector<128x1xf32> to vector<128x64xf32>
    %6 = arith.addf %3, %5 : vector<128x64xf32>
    %c0_6 = arith.constant 0 : index
    %c0_7 = arith.constant 0 : index
    %c0_8 = arith.constant 0 : index
    %7 = vector.load %arg5[%c0_6, %c0_7, %c0_8] : memref<1x128x64xf32, #tpu.memory_space<vmem>>, vector<1x128x64xf32>
    %8 = vector.shape_cast %7 : vector<1x128x64xf32> to vector<128x64xf32>
    %9 = vector.shape_cast %6 : vector<128x64xf32> to vector<1x128x64xf32>
    tpu.vector_store %arg5[%c0_6, %c0_7, %c0_8], %9 {strides = array<i32>} : memref<1x128x64xf32, #tpu.memory_space<vmem>>, vector<1x128x64xf32>,
    return
  }
  func.func @transform_0(%arg0: i32, %arg1: i32) -> (i32, i32, i32) {
    %c0_i32 = arith.constant 0 : i32
    %c0_i32_0 = arith.constant 0 : i32
    return %arg0, %c0_i32, %arg1 : i32, i32, i32
  }
  func.func @transform_1(%arg0: i32, %arg1: i32) -> (i32, i32) {
    %c0_i32 = arith.constant 0 : i32
    %c0_i32_0 = arith.constant 0 : i32
    %c0_i32_1 = arith.constant 0 : i32
    return %c0_i32, %c0_i32_0 : i32, i32
  }
  func.func @transform_2(%arg0: i32, %arg1: i32) -> (i32, i32) {
    %c0_i32 = arith.constant 0 : i32
    %c0_i32_0 = arith.constant 0 : i32
    %c0_i32_1 = arith.constant 0 : i32
    return %c0_i32, %c0_i32_0 : i32, i32
  }
  func.func @transform_3(%arg0: i32, %arg1: i32) -> (i32, i32, i32) {
    %c0_i32 = arith.constant 0 : i32
    %c0_i32_0 = arith.constant 0 : i32
    return %arg0, %c0_i32, %arg1 : i32, i32, i32
  }
}

</mosaic_0001>

<llo_original>
// kernel: tpu_custom_call.1
$region0: #{tpu_custom_call.1}
  #allocation0 [shape = 'u32[]', space=smem, size = 0x4, offset = 0x4, fixed_abs, tag = 'smem constant byte address 0x4 - core index']
  #allocation1 [shape = 'u32[144,128]{1,0:T(1,128)}', space=vmem, size = 0x12000, scoped, tag = 'internal scratch']
  %s0 = inlined_call_operand.vmem [shape: f32[2,128,64], index: 0, kind: input, shape index: {}]
  %s1 = inlined_call_operand.vmem [shape: f32[128,128], index: 1, kind: input, shape index: {}]
  %s2 = inlined_call_operand.vmem [shape: f32[128,1], index: 2, kind: input, shape index: {}]
  %s3 = inlined_call_operand.vmem [shape: f32[2,128,64], index: 3, kind: output, shape index: {}]
  %s4 = sld [smem:[#allocation0]]
  $region45: #{tpu_custom_call.1} parent=0
    _
  %s6 = ssub.s32 1, %s4
  %s7 = scalar_select 0, %s6, %s4
  loop: start=0, step=1, limit=4
  $region2: #{tpu_custom_call.1} parent=0 // loop_pre_header
    _
  $region3: #{tpu_custom_call.1} parent=0 // loop_header
    %s9 = sphi 0, %s13
    %p10 = scmp.ge.s32.totalorder %s9, 4
    %s16 = sphi 0, %s28
    %s17 = sphi 0, %s24
    %s18 = sphi 0, %s16
    %s19 = sphi 0, %s17
    %s20 = sphi 0, %s18
    %s21 = sphi 0, %s19
    %s33 = sphi 0, %s35
    %s36 = sphi 0, %s33
    %s37 = sphi 0, %s36
    %s53 = sphi 0, %s37
    %s57 = sphi 0, %s57
    %s59 = sphi 0, %s57
    %s60 = sphi 0, %s59
    %s74 = sphi 0, %s60
    %s78 = sphi 0, %s78
    %s80 = sphi 0, %s78
    %s81 = sphi 0, %s80
    %s95 = sphi 0, %s81
    %s103 = sphi 0, %s105
    %s106 = sphi 0, %s103
    %s107 = sphi 0, %s106
    %s123 = sphi 0, %s107
  $region4: #{tpu_custom_call.1} parent=0 // loop_header_branch
    %12 = sbr.rel (%p10) target = $region8
  $region5: #{tpu_custom_call.1} parent=0 // loop_body
    %s14 = ssub.s32 %s9, 1
    %s15 = ssub.s32 %s9, 2
    %s22 = sadd.s32 1, %s17
    %p23 = scmp.ge.s32.totalorder %s22, 1
    %s24 = scalar_select %p23, 0, %s22
    %s25 = sadd.s32 1, %s16
    %s26 = scalar_select %p23, %s25, %s16
    %p27 = scmp.ge.s32.totalorder %s26, 2
    %s28 = scalar_select %p27, 0, %s26
    %s29 = ssub.s32 %s16, %s28
    %s30 = ssub.s32 %s17, %s24
    %s31 = sor.u32 %s29, %s30
    %p32 = scmp.eq.s32.totalorder %s31, 0
    %s34 = sadd.s32 %s33, 1
    %s35 = scalar_select %p32, %s33, %s34
    %p38 = pneg %p32
    %p39 = scmp.eq.s32.totalorder %s9, 1
    %p40 = por %p38, %p39
    %p41 = scmp.ne.s32.totalorder %s33, %s36
    %p42 = scmp.eq.s32.totalorder %s9, 0
    %p43 = por %p41, %p42
    %p44 = scmp.ne.s32.totalorder %s33, %s36
    %p45 = scmp.eq.s32.totalorder %s14, 1
    %p46 = por %p44, %p45
    %p47 = scmp.ne.s32.totalorder %s36, %s37
    %p48 = scmp.eq.s32.totalorder %s14, 0
    %p49 = por %p47, %p48
    %p50 = scmp.ne.s32.totalorder %s36, %s37
    %p51 = scmp.eq.s32.totalorder %s15, 1
    %p52 = por %p50, %p51
    %p54 = scmp.ne.s32.totalorder %s37, %s53
    %p55 = scmp.eq.s32.totalorder %s15, 0
    %p56 = por %p54, %p55
    %s58 = sadd.s32 %s57, 1
    %p61 = scmp.eq.s32.totalorder %s9, 1
    %p62 = scmp.ne.s32.totalorder %s57, %s59
    %p63 = scmp.eq.s32.totalorder %s9, 0
    %p64 = por %p62, %p63
    %p65 = scmp.ne.s32.totalorder %s57, %s59
    %p66 = scmp.eq.s32.totalorder %s14, 1
    %p67 = por %p65, %p66
    %p68 = scmp.ne.s32.totalorder %s59, %s60
    %p69 = scmp.eq.s32.totalorder %s14, 0
    %p70 = por %p68, %p69
    %p71 = scmp.ne.s32.totalorder %s59, %s60
    %p72 = scmp.eq.s32.totalorder %s15, 1
    %p73 = por %p71, %p72
    %p75 = scmp.ne.s32.totalorder %s60, %s74
    %p76 = scmp.eq.s32.totalorder %s15, 0
    %p77 = por %p75, %p76
    %s79 = sadd.s32 %s78, 1
    %p82 = scmp.eq.s32.totalorder %s9, 1
    %p83 = scmp.ne.s32.totalorder %s78, %s80
    %p84 = scmp.eq.s32.totalorder %s9, 0
    %p85 = por %p83, %p84
    %p86 = scmp.ne.s32.totalorder %s78, %s80
    %p87 = scmp.eq.s32.totalorder %s14, 1
    %p88 = por %p86, %p87
    %p89 = scmp.ne.s32.totalorder %s80, %s81
    %p90 = scmp.eq.s32.totalorder %s14, 0
    %p91 = por %p89, %p90
    %p92 = scmp.ne.s32.totalorder %s80, %s81
    %p93 = scmp.eq.s32.totalorder %s15, 1
    %p94 = por %p92, %p93
    %p96 = scmp.ne.s32.totalorder %s81, %s95
    %p97 = scmp.eq.s32.totalorder %s15, 0
    %p98 = por %p96, %p97
    %s99 = ssub.s32 %s16, %s28
    %s100 = ssub.s32 %s17, %s24
    %s101 = sor.u32 %s99, %s100
    %p102 = scmp.eq.s32.totalorder %s101, 0
    %s104 = sadd.s32 %s103, 1
    %s105 = scalar_select %p102, %s103, %s104
    %p108 = pneg %p102
    %p109 = scmp.eq.s32.totalorder %s9, 1
    %p110 = por %p108, %p109
    %p111 = scmp.ne.s32.totalorder %s103, %s106
    %p112 = scmp.eq.s32.totalorder %s9, 0
    %p113 = por %p111, %p112
    %p114 = scmp.ne.s32.totalorder %s103, %s106
    %p115 = scmp.eq.s32.totalorder %s14, 1
    %p116 = por %p114, %p115
    %p117 = scmp.ne.s32.totalorder %s106, %s107
    %p118 = scmp.eq.s32.totalorder %s14, 0
    %p119 = por %p117, %p118
    %p120 = scmp.ne.s32.totalorder %s106, %s107
    %p121 = scmp.eq.s32.totalorder %s15, 1
    %p122 = por %p120, %p121
    %p124 = scmp.ne.s32.totalorder %s107, %s123
    %p125 = scmp.eq.s32.totalorder %s15, 0
    %p126 = por %p124, %p125
    %p127 = scmp.le.s32.totalorder 1, %s9
    %p128 = scmp.lt.s32.totalorder %s9, 3
    %p129 = pnand %p127, %p128
    %p130 = pneg %p129
    // Predicated region
    $region9: #{tpu_custom_call.1} parent=5 // pred_check
      _
    $region10: #{tpu_custom_call.1} parent=5 // pred_check_branch
      %132 = sbr.rel (%p129) target = $region12
    $region11: #{tpu_custom_call.1} parent=5 // pred_region
      %s133 = ssub.s32 %s9, 1
      // Predicated region
      $region13: #{tpu_custom_call.1} parent=11 // pred_check
        %p134 = pneg %p70
      $region14: #{tpu_custom_call.1} parent=11 // pred_check_branch
        %136 = sbr.rel (%p134) target = $region16
      $region15: #{tpu_custom_call.1} parent=11 // pred_region
        _
      $region16: #{tpu_custom_call.1} parent=11 // pred_fallthru
        _
      // Predicated region
      $region17: #{tpu_custom_call.1} parent=11 // pred_check
        %p137 = pneg %p91
      $region18: #{tpu_custom_call.1} parent=11 // pred_check_branch
        %139 = sbr.rel (%p137) target = $region20
      $region19: #{tpu_custom_call.1} parent=11 // pred_region
        _
      $region20: #{tpu_custom_call.1} parent=11 // pred_fallthru
        _
    $region12: #{tpu_custom_call.1} parent=5 // pred_fallthru
      _
    %p140 = scmp.lt.s32.totalorder %s9, 2
    // Predicated region
    $region21: #{tpu_custom_call.1} parent=5 // pred_check
      %p141 = pneg %p140
    $region22: #{tpu_custom_call.1} parent=5 // pred_check_branch
      %143 = sbr.rel (%p141) target = $region24
    $region23: #{tpu_custom_call.1} parent=5 // pred_region
      // Predicated region
      $region25: #{tpu_custom_call.1} parent=23 // pred_check
        %p144 = pneg %p43
      $region26: #{tpu_custom_call.1} parent=23 // pred_check_branch
        %146 = sbr.rel (%p144) target = $region28
      $region27: #{tpu_custom_call.1} parent=23 // pred_region
        %p147 = scmp.lt.s32.totalorder %s16, 1
        %s148 = scalar_select %p147, %s16, 1
        %p149 = scmp.lt.s32.totalorder %s17, 0
        %s150 = scalar_select %p149, %s17, 0
        %s151 = smul.addr %s148, 16
        %s152 = sadd.s32 %s150, %s151
        %s153 = smul.addr %s152, 8
        %s154 = scalar_lea.vmem %s0, %s153
      $region28: #{tpu_custom_call.1} parent=23 // pred_fallthru
        _
    $region24: #{tpu_custom_call.1} parent=5 // pred_fallthru
      _
    %p155 = scmp.le.s32.totalorder 1, %s9
    %p156 = scmp.lt.s32.totalorder %s9, 3
    %p157 = pnand %p155, %p156
    %p158 = pneg %p157
    // Predicated region
    $region29: #{tpu_custom_call.1} parent=5 // pred_check
      _
    $region30: #{tpu_custom_call.1} parent=5 // pred_check_branch
      %160 = sbr.rel (%p157) target = $region32
    $region31: #{tpu_custom_call.1} parent=5 // pred_region
      %s161 = ssub.s32 %s9, 1
      %p162 = scmp.lt.s32.totalorder %s18, 1
      %s163 = scalar_select %p162, %s18, 1
      %p164 = scmp.lt.s32.totalorder %s19, 0
      %s165 = scalar_select %p164, %s19, 0
      %s166 = smul.addr %s163, 16
      %s167 = sadd.s32 %s165, %s166
      %s168 = smul.addr %s167, 8
      %s169 = scalar_lea.vmem %s0, %s168
      %p170 = pneg %p49
      %p171 = pneg %p46
      %p172 = pneg %p70
      %p173 = pneg %p67
      %p174 = pneg %p91
      %p175 = pneg %p88
      %p176 = pneg %p119
      %p177 = pneg %p116
      %p178 = scmp.lt.s32.totalorder %s18, 1
      %s179 = scalar_select %p178, %s18, 1
      %p180 = scmp.lt.s32.totalorder %s19, 0
      %s181 = scalar_select %p180, %s19, 0
      %s182 = smul.addr %s179, 16
      %s183 = sadd.s32 %s181, %s182
      %s184 = smul.addr %s183, 8
      %s185 = scalar_lea.vmem %s3, %s184
      %p186 = scmp.lt.s32.totalorder %s18, 1
      %s187 = scalar_select %p186, %s18, 1
      %p188 = scmp.lt.s32.totalorder %s19, 0
      %s189 = scalar_select %p188, %s19, 0
      %s190 = smul.addr %s187, 16
      %s191 = sadd.s32 %s189, %s190
      %s192 = smul.addr %s191, 8
      %s193 = scalar_lea.vmem %s0, %s192
      %p194 = scmp.lt.s32.totalorder %s18, 1
      %s195 = scalar_select %p194, %s18, 1
      %p196 = scmp.lt.s32.totalorder %s19, 0
      %s197 = scalar_select %p196, %s19, 0
      %s198 = smul.addr %s195, 16
      %s199 = sadd.s32 %s197, %s198
      %s200 = smul.addr %s199, 8
      %s201 = scalar_lea.vmem %s3, %s200
      %v202 = vld [vmem:[%s1] sm:$0xff]
      %v203 = vld [vmem:[%s1 + $0x8] sm:$0xff]
      %v204 = vld [vmem:[%s1 + $0x10] sm:$0xff]
      %v205 = vld [vmem:[%s1 + $0x18] sm:$0xff]
      %v206 = vld [vmem:[%s1 + $0x20] sm:$0xff]
      %v207 = vld [vmem:[%s1 + $0x28] sm:$0xff]
      %v208 = vld [vmem:[%s1 + $0x30] sm:$0xff]
      %v209 = vld [vmem:[%s1 + $0x38] sm:$0xff]
      %v210 = vld [vmem:[%s1 + $0x40] sm:$0xff]
      %v211 = vld [vmem:[%s1 + $0x48] sm:$0xff]
      %v212 = vld [vmem:[%s1 + $0x50] sm:$0xff]
      %v213 = vld [vmem:[%s1 + $0x58] sm:$0xff]
      %v214 = vld [vmem:[%s1 + $0x60] sm:$0xff]
      %v215 = vld [vmem:[%s1 + $0x68] sm:$0xff]
      %v216 = vld [vmem:[%s1 + $0x70] sm:$0xff]
      %v217 = vld [vmem:[%s1 + $0x78] sm:$0xff]
      %v218 = vld [vmem:[%s193] sm:$0xff]
      %v219 = vld [vmem:[%s193 + $0x8] sm:$0xff]
      %v220 = vld [vmem:[%s193 + $0x10] sm:$0xff]
      %v221 = vld [vmem:[%s193 + $0x18] sm:$0xff]
      %v222 = vld [vmem:[%s193 + $0x20] sm:$0xff]
      %v223 = vld [vmem:[%s193 + $0x28] sm:$0xff]
      %v224 = vld [vmem:[%s193 + $0x30] sm:$0xff]
      %v225 = vld [vmem:[%s193 + $0x38] sm:$0xff]
      %v226 = vld [vmem:[%s193 + $0x40] sm:$0xff]
      %v227 = vld [vmem:[%s193 + $0x48] sm:$0xff]
      %v228 = vld [vmem:[%s193 + $0x50] sm:$0xff]
      %v229 = vld [vmem:[%s193 + $0x58] sm:$0xff]
      %v230 = vld [vmem:[%s193 + $0x60] sm:$0xff]
      %v231 = vld [vmem:[%s193 + $0x68] sm:$0xff]
      %v232 = vld [vmem:[%s193 + $0x70] sm:$0xff]
      %v233 = vld [vmem:[%s193 + $0x78] sm:$0xff]
      %v234 = vld [vmem:[%s2] sm:$0xff]
      %v235 = vld [vmem:[%s2 + $0x8] sm:$0xff]
      %v236 = vld [vmem:[%s2 + $0x10] sm:$0xff]
      %v237 = vld [vmem:[%s2 + $0x18] sm:$0xff]
      %v238 = vld [vmem:[%s2 + $0x20] sm:$0xff]
      %v239 = vld [vmem:[%s2 + $0x28] sm:$0xff]
      %v240 = vld [vmem:[%s2 + $0x30] sm:$0xff]
      %v241 = vld [vmem:[%s2 + $0x38] sm:$0xff]
      %v242 = vld [vmem:[%s2 + $0x40] sm:$0xff]
      %v243 = vld [vmem:[%s2 + $0x48] sm:$0xff]
      %v244 = vld [vmem:[%s2 + $0x50] sm:$0xff]
      %v245 = vld [vmem:[%s2 + $0x58] sm:$0xff]
      %v246 = vld [vmem:[%s2 + $0x60] sm:$0xff]
      %v247 = vld [vmem:[%s2 + $0x68] sm:$0xff]
      %v248 = vld [vmem:[%s2 + $0x70] sm:$0xff]
      %v249 = vld [vmem:[%s2 + $0x78] sm:$0xff]
      %251 = vset.pattern.permute.xlu0 0
      %252 = vperm.xlu0 %251, %v234
      %v253 = vpop.permute.xlu0 %252
      %256 = vset.pattern.permute.xlu0 0
      %257 = vperm.xlu0 %256, %v235
      %v258 = vpop.permute.xlu0 %257
      %261 = vset.pattern.permute.xlu0 0
      %262 = vperm.xlu0 %261, %v236
      %v263 = vpop.permute.xlu0 %262
      %266 = vset.pattern.permute.xlu0 0
      %267 = vperm.xlu0 %266, %v237
      %v268 = vpop.permute.xlu0 %267
      %271 = vset.pattern.permute.xlu0 0
      %272 = vperm.xlu0 %271, %v238
      %v273 = vpop.permute.xlu0 %272
      %276 = vset.pattern.permute.xlu0 0
      %277 = vperm.xlu0 %276, %v239
      %v278 = vpop.permute.xlu0 %277
      %281 = vset.pattern.permute.xlu0 0
      %282 = vperm.xlu0 %281, %v240
      %v283 = vpop.permute.xlu0 %282
      %286 = vset.pattern.permute.xlu0 0
      %287 = vperm.xlu0 %286, %v241
      %v288 = vpop.permute.xlu0 %287
      %291 = vset.pattern.permute.xlu0 0
      %292 = vperm.xlu0 %291, %v242
      %v293 = vpop.permute.xlu0 %292
      %296 = vset.pattern.permute.xlu0 0
      %297 = vperm.xlu0 %296, %v243
      %v298 = vpop.permute.xlu0 %297
      %301 = vset.pattern.permute.xlu0 0
      %302 = vperm.xlu0 %301, %v244
      %v303 = vpop.permute.xlu0 %302
      %306 = vset.pattern.permute.xlu0 0
      %307 = vperm.xlu0 %306, %v245
      %v308 = vpop.permute.xlu0 %307
      %311 = vset.pattern.permute.xlu0 0
      %312 = vperm.xlu0 %311, %v246
      %v313 = vpop.permute.xlu0 %312
      %316 = vset.pattern.permute.xlu0 0
      %317 = vperm.xlu0 %316, %v247
      %v318 = vpop.permute.xlu0 %317
      %321 = vset.pattern.permute.xlu0 0
      %322 = vperm.xlu0 %321, %v248
      %v323 = vpop.permute.xlu0 %322
      %326 = vset.pattern.permute.xlu0 0
      %327 = vperm.xlu0 %326, %v249
      %v328 = vpop.permute.xlu0 %327
      %330 = vmatprep.subr.mxu0 0.0
      %331 = vmatpush1.msra.mxu0 %v218
      %332 = vmatprep.subr.mxu0 0.0
      %333 = vmatpush1.msra.mxu0 %v219
      %334 = vmatprep.subr.mxu0 0.0
      %335 = vmatpush1.msra.mxu0 %v220
      %336 = vmatprep.subr.mxu0 0.0
      %337 = vmatpush1.msra.mxu0 %v221
      %338 = vmatprep.subr.mxu0 0.0
      %339 = vmatpush1.msra.mxu0 %v222
      %340 = vmatprep.subr.mxu0 0.0
      %341 = vmatpush1.msra.mxu0 %v223
      %342 = vmatprep.subr.mxu0 0.0
      %343 = vmatpush1.msra.mxu0 %v224
      %344 = vmatprep.subr.mxu0 0.0
      %345 = vmatpush1.msra.mxu0 %v225
      %346 = vmatprep.subr.mxu0 0.0
      %347 = vmatpush1.msra.mxu0 %v226
      %348 = vmatprep.subr.mxu0 0.0
      %349 = vmatpush1.msra.mxu0 %v227
      %350 = vmatprep.subr.mxu0 0.0
      %351 = vmatpush1.msra.mxu0 %v228
      %352 = vmatprep.subr.mxu0 0.0
      %353 = vmatpush1.msra.mxu0 %v229
      %354 = vmatprep.subr.mxu0 0.0
      %355 = vmatpush1.msra.mxu0 %v230
      %356 = vmatprep.subr.mxu0 0.0
      %357 = vmatpush1.msra.mxu0 %v231
      %358 = vmatprep.subr.mxu0 0.0
      %359 = vmatpush1.msra.mxu0 %v232
      %360 = vmatprep.subr.mxu0 0.0
      %361 = vmatpush1.msra.mxu0 %v233
      %362 = vmatprep.subr.mxu0 0.0
      %363 = vmatpush1.msra.mxu0 0.0
      %364 = vmatprep.subr.mxu0 0.0
      %365 = vmatpush1.msra.mxu0 0.0
      %366 = vmatprep.subr.mxu0 0.0
      %367 = vmatpush1.msra.mxu0 0.0
      %368 = vmatprep.subr.mxu0 0.0
      %369 = vmatpush1.msra.mxu0 0.0
      %370 = vmatprep.subr.mxu0 0.0
      %371 = vmatpush1.msra.mxu0 0.0
      %372 = vmatprep.subr.mxu0 0.0
      %373 = vmatpush1.msra.mxu0 0.0
      %374 = vmatprep.subr.mxu0 0.0
      %375 = vmatpush1.msra.mxu0 0.0
      %376 = vmatprep.subr.mxu0 0.0
      %377 = vmatpush1.msra.mxu0 0.0
      %378 = vmatprep.subr.mxu0 0.0
      %379 = vmatpush1.msra.mxu0 0.0
      %380 = vmatprep.subr.mxu0 0.0
      %381 = vmatpush1.msra.mxu0 0.0
      %382 = vmatprep.subr.mxu0 0.0
      %383 = vmatpush1.msra.mxu0 0.0
      %384 = vmatprep.subr.mxu0 0.0
      %385 = vmatpush1.msra.mxu0 0.0
      %386 = vmatprep.subr.mxu0 0.0
      %387 = vmatpush1.msra.mxu0 0.0
      %388 = vmatprep.subr.mxu0 0.0
      %389 = vmatpush1.msra.mxu0 0.0
      %390 = vmatprep.subr.mxu0 0.0
      %391 = vmatpush1.msra.mxu0 0.0
      %392 = vmatprep.subr.mxu0 0.0
      %393 = vmatpush1.msra.mxu0 0.0
      %394 = vmatprep.mubr.f32.mxu0 0.0
      %395 = vmatmul.mubr.f32.gmra.mrb[0].mxu0 %v202
      %v396 = vpop.f32.mrb[0].mxu0
      %v397 = vadd.f32 %v253, %v396
      %v398 = vpop.f32.mrb[0].mxu0
      %399 = vmatprep.mubr.f32.mxu0 0.0
      %400 = vmatmul.mubr.f32.gmra.mrb[0].mxu0 %v203
      %v401 = vpop.f32.mrb[0].mxu0
      %v402 = vadd.f32 %v258, %v401
      %v403 = vpop.f32.mrb[0].mxu0
      %404 = vmatprep.mubr.f32.mxu0 0.0
      %405 = vmatmul.mubr.f32.gmra.mrb[0].mxu0 %v204
      %v406 = vpop.f32.mrb[0].mxu0
      %v407 = vadd.f32 %v263, %v406
      %v408 = vpop.f32.mrb[0].mxu0
      %409 = vmatprep.mubr.f32.mxu0 0.0
      %410 = vmatmul.mubr.f32.gmra.mrb[0].mxu0 %v205
      %v411 = vpop.f32.mrb[0].mxu0
      %v412 = vadd.f32 %v268, %v411
      %v413 = vpop.f32.mrb[0].mxu0
      %414 = vmatprep.mubr.f32.mxu0 0.0
      %415 = vmatmul.mubr.f32.gmra.mrb[0].mxu0 %v206
      %v416 = vpop.f32.mrb[0].mxu0
      %v417 = vadd.f32 %v273, %v416
      %v418 = vpop.f32.mrb[0].mxu0
      %419 = vmatprep.mubr.f32.mxu0 0.0
      %420 = vmatmul.mubr.f32.gmra.mrb[0].mxu0 %v207
      %v421 = vpop.f32.mrb[0].mxu0
      %v422 = vadd.f32 %v278, %v421
      %v423 = vpop.f32.mrb[0].mxu0
      %424 = vmatprep.mubr.f32.mxu0 0.0
      %425 = vmatmul.mubr.f32.gmra.mrb[0].mxu0 %v208
      %v426 = vpop.f32.mrb[0].mxu0
      %v427 = vadd.f32 %v283, %v426
      %v428 = vpop.f32.mrb[0].mxu0
      %429 = vmatprep.mubr.f32.mxu0 0.0
      %430 = vmatmul.mubr.f32.gmra.mrb[0].mxu0 %v209
      %v431 = vpop.f32.mrb[0].mxu0
      %v432 = vadd.f32 %v288, %v431
      %v433 = vpop.f32.mrb[0].mxu0
      %434 = vmatprep.mubr.f32.mxu0 0.0
      %435 = vmatmul.mubr.f32.gmra.mrb[0].mxu0 %v210
      %v436 = vpop.f32.mrb[0].mxu0
      %v437 = vadd.f32 %v293, %v436
      %v438 = vpop.f32.mrb[0].mxu0
      %439 = vmatprep.mubr.f32.mxu0 0.0
      %440 = vmatmul.mubr.f32.gmra.mrb[0].mxu0 %v211
      %v441 = vpop.f32.mrb[0].mxu0
      %v442 = vadd.f32 %v298, %v441
      %v443 = vpop.f32.mrb[0].mxu0
      %444 = vmatprep.mubr.f32.mxu0 0.0
      %445 = vmatmul.mubr.f32.gmra.mrb[0].mxu0 %v212
      %v446 = vpop.f32.mrb[0].mxu0
      %v447 = vadd.f32 %v303, %v446
      %v448 = vpop.f32.mrb[0].mxu0
      %449 = vmatprep.mubr.f32.mxu0 0.0
      %450 = vmatmul.mubr.f32.gmra.mrb[0].mxu0 %v213
      %v451 = vpop.f32.mrb[0].mxu0
      %v452 = vadd.f32 %v308, %v451
      %v453 = vpop.f32.mrb[0].mxu0
      %454 = vmatprep.mubr.f32.mxu0 0.0
      %455 = vmatmul.mubr.f32.gmra.mrb[0].mxu0 %v214
      %v456 = vpop.f32.mrb[0].mxu0
      %v457 = vadd.f32 %v313, %v456
      %v458 = vpop.f32.mrb[0].mxu0
      %459 = vmatprep.mubr.f32.mxu0 0.0
      %460 = vmatmul.mubr.f32.gmra.mrb[0].mxu0 %v215
      %v461 = vpop.f32.mrb[0].mxu0
      %v462 = vadd.f32 %v318, %v461
      %v463 = vpop.f32.mrb[0].mxu0
      %464 = vmatprep.mubr.f32.mxu0 0.0
      %465 = vmatmul.mubr.f32.gmra.mrb[0].mxu0 %v216
      %v466 = vpop.f32.mrb[0].mxu0
      %v467 = vadd.f32 %v323, %v466
      %v468 = vpop.f32.mrb[0].mxu0
      %469 = vmatprep.mubr.f32.mxu0 0.0
      %470 = vmatmul.mubr.f32.gmra.mrb[0].mxu0 %v217
      %v471 = vpop.f32.mrb[0].mxu0
      %v472 = vadd.f32 %v328, %v471
      %v473 = vpop.f32.mrb[0].mxu0
      %474 = vdwg.mxu0
      %vm475 = vcmask 523264
      %476 = vst.msk [vmem:[%s201] sm:$0xff] %vm475, %v397
      %477 = vst.msk [vmem:[%s201 + $0x8] sm:$0xff] %vm475, %v402
      %478 = vst.msk [vmem:[%s201 + $0x10] sm:$0xff] %vm475, %v407
      %479 = vst.msk [vmem:[%s201 + $0x18] sm:$0xff] %vm475, %v412
      %480 = vst.msk [vmem:[%s201 + $0x20] sm:$0xff] %vm475, %v417
      %481 = vst.msk [vmem:[%s201 + $0x28] sm:$0xff] %vm475, %v422
      %482 = vst.msk [vmem:[%s201 + $0x30] sm:$0xff] %vm475, %v427
      %483 = vst.msk [vmem:[%s201 + $0x38] sm:$0xff] %vm475, %v432
      %484 = vst.msk [vmem:[%s201 + $0x40] sm:$0xff] %vm475, %v437
      %485 = vst.msk [vmem:[%s201 + $0x48] sm:$0xff] %vm475, %v442
      %486 = vst.msk [vmem:[%s201 + $0x50] sm:$0xff] %vm475, %v447
      %487 = vst.msk [vmem:[%s201 + $0x58] sm:$0xff] %vm475, %v452
      %488 = vst.msk [vmem:[%s201 + $0x60] sm:$0xff] %vm475, %v457
      %489 = vst.msk [vmem:[%s201 + $0x68] sm:$0xff] %vm475, %v462
      %490 = vst.msk [vmem:[%s201 + $0x70] sm:$0xff] %vm475, %v467
      %491 = vst.msk [vmem:[%s201 + $0x78] sm:$0xff] %vm475, %v472
      %p492 = scmp.lt.s32.totalorder %s18, 1
      %s493 = scalar_select %p492, %s18, 1
      %p494 = scmp.lt.s32.totalorder %s19, 0
      %s495 = scalar_select %p494, %s19, 0
      %s496 = smul.addr %s493, 16
      %s497 = sadd.s32 %s495, %s496
      %s498 = smul.addr %s497, 8
      %s499 = scalar_lea.vmem %s3, %s498
      // Predicated region
      $region33: #{tpu_custom_call.1} parent=31 // pred_check
        %p500 = pneg %p116
      $region34: #{tpu_custom_call.1} parent=31 // pred_check_branch
        %502 = sbr.rel (%p500) target = $region36
      $region35: #{tpu_custom_call.1} parent=31 // pred_region
        _
      $region36: #{tpu_custom_call.1} parent=31 // pred_fallthru
        _
    $region32: #{tpu_custom_call.1} parent=5 // pred_fallthru
      _
    %p503 = scmp.le.s32.totalorder 2, %s9
    // Predicated region
    $region37: #{tpu_custom_call.1} parent=5 // pred_check
      %p504 = pneg %p503
    $region38: #{tpu_custom_call.1} parent=5 // pred_check_branch
      %506 = sbr.rel (%p504) target = $region40
    $region39: #{tpu_custom_call.1} parent=5 // pred_region
      %s507 = ssub.s32 %s9, 2
      // Predicated region
      $region41: #{tpu_custom_call.1} parent=39 // pred_check
        %p508 = pneg %p122
      $region42: #{tpu_custom_call.1} parent=39 // pred_check_branch
        %510 = sbr.rel (%p508) target = $region44
      $region43: #{tpu_custom_call.1} parent=39 // pred_region
        %p511 = scmp.lt.s32.totalorder %s20, 1
        %s512 = scalar_select %p511, %s20, 1
        %p513 = scmp.lt.s32.totalorder %s21, 0
        %s514 = scalar_select %p513, %s21, 0
        %s515 = smul.addr %s512, 16
        %s516 = sadd.s32 %s514, %s515
        %s517 = smul.addr %s516, 8
        %s518 = scalar_lea.vmem %s3, %s517
      $region44: #{tpu_custom_call.1} parent=39 // pred_fallthru
        _
    $region40: #{tpu_custom_call.1} parent=5 // pred_fallthru
      _
  $region6: #{tpu_custom_call.1} parent=0 // loop_footer
    %s13 = sadd.s32 1, %s9
  $region7: #{tpu_custom_call.1} parent=0 // loop_footer_branch
    %8 = sbr.rel target = $region3
  $region8: #{tpu_custom_call.1} parent=0 // loop_exit
    _

</llo_original>
